<compile_context>
chip_gen: v5e
topology: v5e:2x2
jax: 0.10.0
libtpu: 0.0.40
codegen_flags: <defaults>
</compile_context>

<pallas_src>
from itertools import combinations

import jax
import jax.numpy as jnp
from jax.experimental import pallas as pl
from jax.experimental.pallas import tpu as pltpu

# ---------------- small, deterministic configuration ----------------
B = 8               # batch size
DENSE_DIM = 3       # number of dense features
NUM_FIELDS = 4      # number of sparse features (fields)
FEAT_NUM = 10       # vocab size of each sparse feature
EMBED_DIM = 8       # embedding dim
HIDDEN_UNITS = (32, 16)
LAYER_NUM = 2       # CIN layers
PAIRS = tuple(combinations(range(NUM_FIELDS), 2))
NUM_PAIRS = len(PAIRS)
SE_R = max(1, NUM_FIELDS // 3)                 # SENet reduction width (= 1 here)

FE = NUM_FIELDS * EMBED_DIM                    # 32
FFE = NUM_FIELDS * NUM_FIELDS * EMBED_DIM      # 128
PE = NUM_PAIRS * EMBED_DIM                     # 48
LANE = 128
assert PE <= LANE and FE <= LANE and FFE % LANE == 0

# ---- per-call data slab layout (lane offsets all 128-aligned) ----
D_OFF_DENSE = 0
D_OFF_XLE = LANE
D_OFF_X0 = 2 * LANE
D_OFF_XI = D_OFF_X0 + FFE                      # 384
D_OFF_XJ = D_OFF_XI + LANE                     # 512
DATA_COLS = D_OFF_XJ + PE                      # 560

# ---- hoisted weight slab layout (row offsets all 16-aligned for bf16) ----
_MAT_SHAPES = (
    [(f"cin_M{l}", FE, FFE) for l in range(LAYER_NUM)]
    + [("cin_R", FFE, FE),
       ("w_bd", PE, PE),
       ("w1aT", PE, HIDDEN_UNITS[0]),
       ("w1bT", PE, HIDDEN_UNITS[0]),
       ("w2T", HIDDEN_UNITS[0], HIDDEN_UNITS[1]),
       ("se_v", FE, SE_R),
       ("se_w2T", SE_R, NUM_FIELDS),
       ("e_ij", NUM_FIELDS, LANE + PE)]
)


def _build_mat_layout(shapes, align=16):
    layout, r = {}, 0
    for name, nr, nc in shapes:
        layout[name] = (r, nr, nc)
        r += -(-nr // align) * align
    return layout, r, max(nc for _, _, nc in shapes)


MAT_LAYOUT, MAT_ROWS, MAT_COLS = _build_mat_layout(_MAT_SHAPES)

# ---- row-vector slab layout ----
ROW_CIN_B = 0                                   # + layer
ROW_B1, ROW_G1, ROW_BE1 = 2, 3, 4
ROW_B2, ROW_G2, ROW_BE2 = 5, 6, 7
ROW_HEAD_DENSE = 8
ROW_HEAD_CIN = 9                                # + layer
ROW_HEAD_H2 = 11
ROW_HEAD_BIAS = 12
N_ROWS = 13
ROW_COLS = max(FE, HIDDEN_UNITS[0], HIDDEN_UNITS[1], DENSE_DIM)


# ============================= Pallas kernel =============================
def assembly1_kernel(data_ref, mats_ref, rows_ref, out_ref):
    f32, bf16 = jnp.float32, jnp.bfloat16
    H1, H2 = HIDDEN_UNITS

    def mat(name):                               # bf16 weight tile from the slab
        r0, nr, nc = MAT_LAYOUT[name]
        return mats_ref[r0:r0 + nr, 0:nc]

    def row(i, n):                               # [1, n] f32 row vector
        return rows_ref[i:i + 1, 0:n]

    def mxu(a, w):                               # single-pass bf16 MXU, f32 acc
        return jnp.dot(a.astype(bf16), w, preferred_element_type=f32)

    dense = data_ref[:, D_OFF_DENSE:D_OFF_DENSE + DENSE_DIM]       # [B, 3]
    x_le = data_ref[:, D_OFF_XLE:D_OFF_XLE + FE]                   # [B, F*E]
    x0_rep = data_ref[:, D_OFF_X0:D_OFF_X0 + FFE]                  # [B, F*F*E]
    xi = data_ref[:, D_OFF_XI:D_OFF_XI + PE]                       # [B, P*E]
    xj = data_ref[:, D_OFF_XJ:D_OFF_XJ + PE]                       # [B, P*E]

    # ---- fused head accumulator: VPU multiply + lane reduce (no concat) ----
    logit = jnp.sum(dense * row(ROW_HEAD_DENSE, DENSE_DIM), axis=-1, keepdims=True)

    # ---- CIN: two wide matmuls per layer (fused conv weights) ----
    h = x_le
    for l in range(LAYER_NUM):
        t = mxu(h, mat(f"cin_M{l}"))                               # [B, F*F*E]
        pre = mxu(x0_rep * t, mat("cin_R")) + row(ROW_CIN_B + l, FE)
        h = jnp.maximum(pre, 0.0)                                  # [B, F*E]
        # embed-dim sum + cin_fc folded into a weight row -> lane reduce
        logit += jnp.sum(h * row(ROW_HEAD_CIN + l, FE), axis=-1, keepdims=True)

    # ---- SENet (mean-pool + fc1 pre-folded; a_i|a_j in a single dot) ----
    a1 = jnp.maximum(mxu(x_le, mat("se_v")), 0.0)                  # [B, r]
    A = jnp.maximum(mxu(a1, mat("se_w2T")), 0.0)                   # [B, F]
    a_ij = mxu(A, mat("e_ij"))                                     # [B, 128+P*E]
    a_i = a_ij[:, 0:PE]
    a_j = a_ij[:, LANE:LANE + PE]                                  # 128-aligned slice

    # ---- Bilinear field interaction: one block-diagonal matmul ----
    ffm = mxu(xi, mat("w_bd")) * xj                                # [B, P*E]
    se_ffm = ffm * a_i * a_j                                       # == bilinear(V)

    # ---- MLP: Linear -> BatchNorm1d (one-pass batch stats) -> ReLU -> Dropout(0) ----
    def bn(hh, g, b):
        s1 = jnp.sum(hh, axis=0, keepdims=True)
        s2 = jnp.sum(hh * hh, axis=0, keepdims=True)
        mu = s1 * (1.0 / B)
        var = jnp.maximum(s2 * (1.0 / B) - mu * mu, 0.0)
        return (hh - mu) * jax.lax.rsqrt(var + 1e-5) * g + b

    h1 = mxu(ffm, mat("w1aT")) + mxu(se_ffm, mat("w1bT")) + row(ROW_B1, H1)
    h1 = jnp.maximum(bn(h1, row(ROW_G1, H1), row(ROW_BE1, H1)), 0.0)
    h2 = mxu(h1, mat("w2T")) + row(ROW_B2, H2)
    h2 = jnp.maximum(bn(h2, row(ROW_G2, H2), row(ROW_BE2, H2)), 0.0)

    logit += jnp.sum(h2 * row(ROW_HEAD_H2, H2), axis=-1, keepdims=True)
    logit += row(ROW_HEAD_BIAS, 1)
    out_ref[...] = jax.nn.sigmoid(logit)


# ===================== hoisted (one-time) weight packing =====================
def pack_weights(params):
    F, E, L, P = NUM_FIELDS, EMBED_DIM, LAYER_NUM, NUM_PAIRS
    H1, H2 = HIDDEN_UNITS
    f32 = jnp.float32

    with jax.default_matmul_precision("highest"):   # exact f32 packing math
        eyeE = jnp.eye(E, dtype=f32)
        Wc = params["cin_w"].reshape(L, F, F, F)                    # [l, o, i, j]
        # M_l[j*E+e, (i*F+o)*E+e'] = W_l[o, i*F+j] * delta(e, e')
        cin_M = jnp.einsum("loij,ef->ljeiof", Wc, eyeE).reshape(L, FE, FFE)
        cin_R = jnp.tile(jnp.eye(FE, dtype=f32), (F, 1))            # [F*F*E, F*E]

        bil_wT = jnp.transpose(params["bil_w"], (0, 2, 1))          # [P, E, E]
        w_bd = jnp.einsum("pq,pab->paqb", jnp.eye(P, dtype=f32),
                          bil_wT).reshape(PE, PE)

        w1T = params["mlp_w1"].T                                    # [2*P*E, H1]
        w1aT, w1bT = w1T[:PE], w1T[PE:]
        w2T = params["mlp_w2"].T

        # mean over embed dim folded with the first SENet FC (no ReLU between)
        mean_M = jnp.kron(jnp.eye(F, dtype=f32), jnp.ones((E, 1), f32)) / E
        se_v = mean_M @ params["se_w1"].T                           # [F*E, r]
        se_w2T = params["se_w2"].T                                  # [r, F]

        e_ij = jnp.zeros((F, LANE + PE), f32)                       # [F, 128+P*E]
        for p, (i, j) in enumerate(PAIRS):
            e_ij = e_ij.at[i, p * E:(p + 1) * E].set(1.0)
            e_ij = e_ij.at[j, LANE + p * E:LANE + (p + 1) * E].set(1.0)

    mats = jnp.zeros((MAT_ROWS, MAT_COLS), f32)
    pieces = {f"cin_M{l}": cin_M[l] for l in range(L)}
    pieces.update(cin_R=cin_R, w_bd=w_bd, w1aT=w1aT, w1bT=w1bT, w2T=w2T,
                  se_v=se_v, se_w2T=se_w2T, e_ij=e_ij)
    for name, val in pieces.items():
        r0, nr, nc = MAT_LAYOUT[name]
        assert val.shape == (nr, nc), (name, val.shape, (nr, nc))
        mats = mats.at[r0:r0 + nr, 0:nc].set(val)
    mats = mats.astype(jnp.bfloat16)              # single-pass bf16 MXU operands

    rows = jnp.zeros((N_ROWS, ROW_COLS), f32)
    for l in range(L):
        rows = rows.at[ROW_CIN_B + l, :FE].set(jnp.repeat(params["cin_b"][l], E))
        rows = rows.at[ROW_HEAD_CIN + l, :FE].set(
            jnp.repeat(params["cin_fc_w"][0, l * F:(l + 1) * F], E))
    rows = rows.at[ROW_B1, :H1].set(params["mlp_b1"])
    rows = rows.at[ROW_G1, :H1].set(params["bn1_g"])
    rows = rows.at[ROW_BE1, :H1].set(params["bn1_b"])
    rows = rows.at[ROW_B2, :H2].set(params["mlp_b2"])
    rows = rows.at[ROW_G2, :H2].set(params["bn2_g"])
    rows = rows.at[ROW_BE2, :H2].set(params["bn2_b"])
    rows = rows.at[ROW_HEAD_DENSE, :DENSE_DIM].set(params["wide_w"][0])
    rows = rows.at[ROW_HEAD_H2, :H2].set(params["mlp_w3"][0])
    rows = rows.at[ROW_HEAD_BIAS, 0].set(
        params["wide_b"][0] + params["cin_fc_b"][0] + params["mlp_b3"][0])

    return dict(embed=params["embed"], mats=mats, rows=rows)


# ============================= per-call forward =============================
def assembly1_forward(x, packed):
    F, E = NUM_FIELDS, EMBED_DIM
    f32 = jnp.float32

    dense = x[:, :DENSE_DIM]
    sparse = x[:, DENSE_DIM:].astype(jnp.int32)
    embeds = [jnp.take(packed["embed"][f], sparse[:, f], axis=0) for f in range(F)]
    x_bfe = jnp.stack(embeds, axis=1)                               # [B, F, E]

    x_le = x_bfe.reshape(B, FE)
    x0_rep = jnp.broadcast_to(x_bfe[:, :, None, :], (B, F, F, E)).reshape(B, FFE)
    xi = jnp.concatenate([x_bfe[:, i, :] for i, _ in PAIRS], axis=1)   # [B, P*E]
    xj = jnp.concatenate([x_bfe[:, j, :] for _, j in PAIRS], axis=1)

    data = jnp.zeros((B, DATA_COLS), f32)
    data = data.at[:, D_OFF_DENSE:D_OFF_DENSE + DENSE_DIM].set(dense)
    data = data.at[:, D_OFF_XLE:D_OFF_XLE + FE].set(x_le)
    data = data.at[:, D_OFF_X0:D_OFF_X0 + FFE].set(x0_rep)
    data = data.at[:, D_OFF_XI:D_OFF_XI + PE].set(xi)
    data = data.at[:, D_OFF_XJ:D_OFF_XJ + PE].set(xj)

    out = pl.pallas_call(
        assembly1_kernel,
        out_shape=jax.ShapeDtypeStruct((B, 1), jnp.float32),
        in_specs=[pl.BlockSpec(memory_space=pltpu.MemorySpace.VMEM)] * 3,
        out_specs=pl.BlockSpec(memory_space=pltpu.MemorySpace.VMEM),
    )(data, packed["mats"], packed["rows"])
    return out[:, 0]


# ===================== pure-JAX reference (mirrors PyTorch) =====================
def assembly1_reference(x, params):
    with jax.default_matmul_precision("highest"):
        F, E, L = NUM_FIELDS, EMBED_DIM, LAYER_NUM
        dense = x[:, :DENSE_DIM]
        sparse = x[:, DENSE_DIM:].astype(jnp.int32)
        embeds = [jnp.take(params["embed"][f], sparse[:, f], axis=0) for f in range(F)]
        xe = jnp.stack(embeds, axis=1)                              # [B, F, E]

        wide_out = dense @ params["wide_w"].T + params["wide_b"]

        # CIN
        x0 = xe[:, :, None, :]
        h = xe
        xs = []
        for l in range(L):
            z = (x0 * h[:, None, :, :]).reshape(B, F * F, E)
            conv = (jnp.einsum("oc,bce->boe", params["cin_w"][l], z)
                    + params["cin_b"][l][None, :, None])
            h = jax.nn.relu(conv)
            xs.append(h)
        cin_feat = jnp.sum(jnp.concatenate(xs, axis=1), axis=2)
        cin_out = cin_feat @ params["cin_fc_w"].T + params["cin_fc_b"]

        # SENet
        Z = jnp.mean(xe, axis=-1)
        A = jax.nn.relu(jax.nn.relu(Z @ params["se_w1"].T) @ params["se_w2"].T)
        V = xe * A[:, :, None]

        # Bilinear (field_interaction)
        def bilinear(t):
            return jnp.stack([(t[:, i, :] @ params["bil_w"][p].T) * t[:, j, :]
                              for p, (i, j) in enumerate(PAIRS)], axis=1)

        x_inter = jnp.concatenate([bilinear(xe), bilinear(V)], axis=1).reshape(B, -1)

        def bn(hh, g, b):
            mu = jnp.mean(hh, axis=0, keepdims=True)
            var = jnp.mean((hh - mu) ** 2, axis=0, keepdims=True)
            return (hh - mu) / jnp.sqrt(var + 1e-5) * g + b

        h1 = jax.nn.relu(bn(x_inter @ params["mlp_w1"].T + params["mlp_b1"],
                            params["bn1_g"], params["bn1_b"]))
        h2 = jax.nn.relu(bn(h1 @ params["mlp_w2"].T + params["mlp_b2"],
                            params["bn2_g"], params["bn2_b"]))
        x_deep = h2 @ params["mlp_w3"].T + params["mlp_b3"]

        return jax.nn.sigmoid(cin_out + wide_out + x_deep)[:, 0]


# ============================= deterministic init =============================
def init_params(key):
    F, E, L = NUM_FIELDS, EMBED_DIM, LAYER_NUM
    P = NUM_PAIRS
    H1, H2 = HIDDEN_UNITS
    ks = jax.random.split(key, 16)
    s = 0.1

    def rnd(k, shape):
        return jax.random.normal(k, shape, jnp.float32) * s

    return dict(
        embed=rnd(ks[0], (F, FEAT_NUM, E)),
        wide_w=rnd(ks[1], (1, DENSE_DIM)), wide_b=rnd(ks[2], (1,)),
        cin_w=rnd(ks[3], (L, F, F * F)), cin_b=rnd(ks[4], (L, F)),
        cin_fc_w=rnd(ks[5], (1, F * L)), cin_fc_b=rnd(ks[6], (1,)),
        se_w1=rnd(ks[7], (SE_R, F)), se_w2=rnd(ks[8], (F, SE_R)),
        bil_w=rnd(ks[9], (P, E, E)),
        mlp_w1=rnd(ks[10], (H1, 2 * PE)), mlp_b1=rnd(ks[11], (H1,)),
        bn1_g=jnp.ones((H1,), jnp.float32), bn1_b=jnp.zeros((H1,), jnp.float32),
        mlp_w2=rnd(ks[12], (H2, H1)), mlp_b2=rnd(ks[13], (H2,)),
        bn2_g=jnp.ones((H2,), jnp.float32), bn2_b=jnp.zeros((H2,), jnp.float32),
        mlp_w3=rnd(ks[14], (1, H2)), mlp_b3=rnd(ks[15], (1,)),
    )


if __name__ == "__main__":
    key = jax.random.PRNGKey(0)
    pkey, dkey, skey = jax.random.split(key, 3)
    params = init_params(pkey)

    dense_vals = jax.random.normal(dkey, (B, DENSE_DIM), jnp.float32)
    sparse_idx = jax.random.randint(skey, (B, NUM_FIELDS), 0, FEAT_NUM)
    x = jnp.concatenate([dense_vals, sparse_idx.astype(jnp.float32)], axis=1)  # [B, 7]

    packed = pack_weights(params)               # hoisted: runs ONCE, not per call
    forward = jax.jit(assembly1_forward)

    out = jax.block_until_ready(forward(x, packed))
    ref = jax.block_until_ready(assembly1_reference(x, params))

    assert out.shape == (B,), out.shape
    assert bool(jnp.all(jnp.isfinite(out)))
    max_err = float(jnp.max(jnp.abs(out - ref)))
    # Kernel uses single-pass bf16 MXU dots (reference is "highest"-precision
    # f32); bf16 rounding amplified by the batch-stat BatchNorms bounds the
    # post-sigmoid error comfortably below 2e-3 at these shapes.
    assert max_err < 2e-3, f"mismatch vs reference: {max_err}"
    print("KERNEL_OK")
</pallas_src>

<mosaic_0001>
module attributes {stable_mosaic.version = 11 : i64} {
  func.func @assembly1_kernel(%arg0: memref<8x560xf32, #tpu.memory_space<vmem>>, %arg1: memref<432x176xbf16, #tpu.memory_space<vmem>>, %arg2: memref<13x32xf32, #tpu.memory_space<vmem>>, %arg3: memref<8x1xf32, #tpu.memory_space<vmem>>) attributes {dimension_semantics = [], scalar_prefetch = 0 : i64, scratch_operands = 0 : i64, tpu.core_type = #tpu.core_type<tc>} {
    %c0 = arith.constant 0 : index
    %c0_0 = arith.constant 0 : index
    %0 = vector.load %arg0[%c0, %c0_0] : memref<8x560xf32, #tpu.memory_space<vmem>>, vector<8x3xf32>
    %c0_1 = arith.constant 0 : index
    %c128 = arith.constant 128 : index
    %1 = vector.load %arg0[%c0_1, %c128] : memref<8x560xf32, #tpu.memory_space<vmem>>, vector<8x32xf32>
    %c0_2 = arith.constant 0 : index
    %c256 = arith.constant 256 : index
    %2 = vector.load %arg0[%c0_2, %c256] : memref<8x560xf32, #tpu.memory_space<vmem>>, vector<8x128xf32>
    %c0_3 = arith.constant 0 : index
    %c384 = arith.constant 384 : index
    %3 = vector.load %arg0[%c0_3, %c384] : memref<8x560xf32, #tpu.memory_space<vmem>>, vector<8x48xf32>
    %c0_4 = arith.constant 0 : index
    %c512 = arith.constant 512 : index
    %4 = vector.load %arg0[%c0_4, %c512] : memref<8x560xf32, #tpu.memory_space<vmem>>, vector<8x48xf32>
    %c8 = arith.constant 8 : index
    %c0_5 = arith.constant 0 : index
    %5 = vector.load %arg2[%c8, %c0_5] : memref<13x32xf32, #tpu.memory_space<vmem>>, vector<1x3xf32>
    %6 = vector.broadcast %5 : vector<1x3xf32> to vector<8x3xf32>
    %7 = arith.mulf %0, %6 : vector<8x3xf32>
    %cst = arith.constant dense<0.000000e+00> : vector<8xf32>
    %8 = vector.multi_reduction <add>, %7, %cst [1] : vector<8x3xf32> to vector<8xf32>
    %9 = vector.shape_cast %8 : vector<8xf32> to vector<8x1xf32>
    %c0_6 = arith.constant 0 : index
    %c0_7 = arith.constant 0 : index
    %10 = vector.load %arg1[%c0_6, %c0_7] : memref<432x176xbf16, #tpu.memory_space<vmem>>, vector<32x128xbf16>
    %11 = arith.truncf %1 : vector<8x32xf32> to vector<8x32xbf16>
    %cst_8 = arith.constant dense<0.000000e+00> : vector<8x128xf32>
    %12 = tpu.matmul %11, %10, %cst_8 {dimension_numbers = #tpu.dot_dimension_numbers<[1], [0], [0], [1], [0, 0, 1, 1], [], []>} : vector<8x32xbf16>, vector<32x128xbf16>, vector<8x128xf32> -> vector<8x128xf32>
    %13 = arith.mulf %2, %12 : vector<8x128xf32>
    %c64 = arith.constant 64 : index
    %c0_9 = arith.constant 0 : index
    %14 = vector.load %arg1[%c64, %c0_9] : memref<432x176xbf16, #tpu.memory_space<vmem>>, vector<128x32xbf16>
    %15 = arith.truncf %13 : vector<8x128xf32> to vector<8x128xbf16>
    %cst_10 = arith.constant dense<0.000000e+00> : vector<8x32xf32>
    %16 = tpu.matmul %15, %14, %cst_10 {dimension_numbers = #tpu.dot_dimension_numbers<[1], [0], [0], [1], [0, 0, 1, 1], [], []>} : vector<8x128xbf16>, vector<128x32xbf16>, vector<8x32xf32> -> vector<8x32xf32>
    %c0_11 = arith.constant 0 : index
    %c0_12 = arith.constant 0 : index
    %17 = vector.load %arg2[%c0_11, %c0_12] : memref<13x32xf32, #tpu.memory_space<vmem>>, vector<1x32xf32>
    %18 = vector.broadcast %17 : vector<1x32xf32> to vector<8x32xf32>
    %19 = arith.addf %16, %18 : vector<8x32xf32>
    %cst_13 = arith.constant 0.000000e+00 : f32
    %20 = vector.broadcast %cst_13 : f32 to vector<8x32xf32>
    %21 = arith.maximumf %19, %20 : vector<8x32xf32>
    %c9 = arith.constant 9 : index
    %c0_14 = arith.constant 0 : index
    %22 = vector.load %arg2[%c9, %c0_14] : memref<13x32xf32, #tpu.memory_space<vmem>>, vector<1x32xf32>
    %23 = vector.broadcast %22 : vector<1x32xf32> to vector<8x32xf32>
    %24 = arith.mulf %21, %23 : vector<8x32xf32>
    %cst_15 = arith.constant dense<0.000000e+00> : vector<8xf32>
    %25 = vector.multi_reduction <add>, %24, %cst_15 [1] : vector<8x32xf32> to vector<8xf32>
    %26 = vector.shape_cast %25 : vector<8xf32> to vector<8x1xf32>
    %27 = arith.addf %9, %26 : vector<8x1xf32>
    %c32 = arith.constant 32 : index
    %c0_16 = arith.constant 0 : index
    %28 = vector.load %arg1[%c32, %c0_16] : memref<432x176xbf16, #tpu.memory_space<vmem>>, vector<32x128xbf16>
    %29 = arith.truncf %21 : vector<8x32xf32> to vector<8x32xbf16>
    %cst_17 = arith.constant dense<0.000000e+00> : vector<8x128xf32>
    %30 = tpu.matmul %29, %28, %cst_17 {dimension_numbers = #tpu.dot_dimension_numbers<[1], [0], [0], [1], [0, 0, 1, 1], [], []>} : vector<8x32xbf16>, vector<32x128xbf16>, vector<8x128xf32> -> vector<8x128xf32>
    %31 = arith.mulf %2, %30 : vector<8x128xf32>
    %c64_18 = arith.constant 64 : index
    %c0_19 = arith.constant 0 : index
    %32 = vector.load %arg1[%c64_18, %c0_19] : memref<432x176xbf16, #tpu.memory_space<vmem>>, vector<128x32xbf16>
    %33 = arith.truncf %31 : vector<8x128xf32> to vector<8x128xbf16>
    %cst_20 = arith.constant dense<0.000000e+00> : vector<8x32xf32>
    %34 = tpu.matmul %33, %32, %cst_20 {dimension_numbers = #tpu.dot_dimension_numbers<[1], [0], [0], [1], [0, 0, 1, 1], [], []>} : vector<8x128xbf16>, vector<128x32xbf16>, vector<8x32xf32> -> vector<8x32xf32>
    %c1 = arith.constant 1 : index
    %c0_21 = arith.constant 0 : index
    %35 = vector.load %arg2[%c1, %c0_21] : memref<13x32xf32, #tpu.memory_space<vmem>>, vector<1x32xf32>
    %36 = vector.broadcast %35 : vector<1x32xf32> to vector<8x32xf32>
    %37 = arith.addf %34, %36 : vector<8x32xf32>
    %cst_22 = arith.constant 0.000000e+00 : f32
    %38 = vector.broadcast %cst_22 : f32 to vector<8x32xf32>
    %39 = arith.maximumf %37, %38 : vector<8x32xf32>
    %c10 = arith.constant 10 : index
    %c0_23 = arith.constant 0 : index
    %40 = vector.load %arg2[%c10, %c0_23] : memref<13x32xf32, #tpu.memory_space<vmem>>, vector<1x32xf32>
    %41 = vector.broadcast %40 : vector<1x32xf32> to vector<8x32xf32>
    %42 = arith.mulf %39, %41 : vector<8x32xf32>
    %cst_24 = arith.constant dense<0.000000e+00> : vector<8xf32>
    %43 = vector.multi_reduction <add>, %42, %cst_24 [1] : vector<8x32xf32> to vector<8xf32>
    %44 = vector.shape_cast %43 : vector<8xf32> to vector<8x1xf32>
    %45 = arith.addf %27, %44 : vector<8x1xf32>
    %c368 = arith.constant 368 : index
    %c0_25 = arith.constant 0 : index
    %46 = vector.load %arg1[%c368, %c0_25] : memref<432x176xbf16, #tpu.memory_space<vmem>>, vector<32x1xbf16>
    %47 = arith.truncf %1 : vector<8x32xf32> to vector<8x32xbf16>
    %cst_26 = arith.constant dense<0.000000e+00> : vector<8x1xf32>
    %48 = tpu.matmul %47, %46, %cst_26 {dimension_numbers = #tpu.dot_dimension_numbers<[1], [0], [0], [1], [0, 0, 1, 1], [], []>} : vector<8x32xbf16>, vector<32x1xbf16>, vector<8x1xf32> -> vector<8x1xf32>
    %cst_27 = arith.constant 0.000000e+00 : f32
    %49 = vector.broadcast %cst_27 : f32 to vector<8x1xf32>
    %50 = arith.maximumf %48, %49 : vector<8x1xf32>
    %c400 = arith.constant 400 : index
    %c0_28 = arith.constant 0 : index
    %51 = vector.load %arg1[%c400, %c0_28] : memref<432x176xbf16, #tpu.memory_space<vmem>>, vector<1x4xbf16>
    %52 = arith.truncf %50 : vector<8x1xf32> to vector<8x1xbf16>
    %cst_29 = arith.constant dense<0.000000e+00> : vector<8x4xf32>
    %53 = tpu.matmul %52, %51, %cst_29 {dimension_numbers = #tpu.dot_dimension_numbers<[1], [0], [0], [1], [0, 0, 1, 1], [], []>} : vector<8x1xbf16>, vector<1x4xbf16>, vector<8x4xf32> -> vector<8x4xf32>
    %cst_30 = arith.constant 0.000000e+00 : f32
    %54 = vector.broadcast %cst_30 : f32 to vector<8x4xf32>
    %55 = arith.maximumf %53, %54 : vector<8x4xf32>
    %c416 = arith.constant 416 : index
    %c0_31 = arith.constant 0 : index
    %56 = vector.load %arg1[%c416, %c0_31] : memref<432x176xbf16, #tpu.memory_space<vmem>>, vector<4x176xbf16>
    %57 = arith.truncf %55 : vector<8x4xf32> to vector<8x4xbf16>
    %cst_32 = arith.constant dense<0.000000e+00> : vector<8x176xf32>
    %58 = tpu.matmul %57, %56, %cst_32 {dimension_numbers = #tpu.dot_dimension_numbers<[1], [0], [0], [1], [0, 0, 1, 1], [], []>} : vector<8x4xbf16>, vector<4x176xbf16>, vector<8x176xf32> -> vector<8x176xf32>
    %59 = vector.extract_strided_slice %58 {offsets = [0, 0], sizes = [8, 48], strides = [1, 1]} : vector<8x176xf32> to vector<8x48xf32>
    %60 = vector.extract_strided_slice %58 {offsets = [0, 128], sizes = [8, 48], strides = [1, 1]} : vector<8x176xf32> to vector<8x48xf32>
    %c192 = arith.constant 192 : index
    %c0_33 = arith.constant 0 : index
    %61 = vector.load %arg1[%c192, %c0_33] : memref<432x176xbf16, #tpu.memory_space<vmem>>, vector<48x48xbf16>
    %62 = arith.truncf %3 : vector<8x48xf32> to vector<8x48xbf16>
    %cst_34 = arith.constant dense<0.000000e+00> : vector<8x48xf32>
    %63 = tpu.matmul %62, %61, %cst_34 {dimension_numbers = #tpu.dot_dimension_numbers<[1], [0], [0], [1], [0, 0, 1, 1], [], []>} : vector<8x48xbf16>, vector<48x48xbf16>, vector<8x48xf32> -> vector<8x48xf32>
    %64 = arith.mulf %63, %4 : vector<8x48xf32>
    %65 = arith.mulf %64, %59 : vector<8x48xf32>
    %66 = arith.mulf %65, %60 : vector<8x48xf32>
    %c240 = arith.constant 240 : index
    %c0_35 = arith.constant 0 : index
    %67 = vector.load %arg1[%c240, %c0_35] : memref<432x176xbf16, #tpu.memory_space<vmem>>, vector<48x32xbf16>
    %68 = arith.truncf %64 : vector<8x48xf32> to vector<8x48xbf16>
    %cst_36 = arith.constant dense<0.000000e+00> : vector<8x32xf32>
    %69 = tpu.matmul %68, %67, %cst_36 {dimension_numbers = #tpu.dot_dimension_numbers<[1], [0], [0], [1], [0, 0, 1, 1], [], []>} : vector<8x48xbf16>, vector<48x32xbf16>, vector<8x32xf32> -> vector<8x32xf32>
    %c288 = arith.constant 288 : index
    %c0_37 = arith.constant 0 : index
    %70 = vector.load %arg1[%c288, %c0_37] : memref<432x176xbf16, #tpu.memory_space<vmem>>, vector<48x32xbf16>
    %71 = arith.truncf %66 : vector<8x48xf32> to vector<8x48xbf16>
    %cst_38 = arith.constant dense<0.000000e+00> : vector<8x32xf32>
    %72 = tpu.matmul %71, %70, %cst_38 {dimension_numbers = #tpu.dot_dimension_numbers<[1], [0], [0], [1], [0, 0, 1, 1], [], []>} : vector<8x48xbf16>, vector<48x32xbf16>, vector<8x32xf32> -> vector<8x32xf32>
    %73 = arith.addf %69, %72 : vector<8x32xf32>
    %c2 = arith.constant 2 : index
    %c0_39 = arith.constant 0 : index
    %74 = vector.load %arg2[%c2, %c0_39] : memref<13x32xf32, #tpu.memory_space<vmem>>, vector<1x32xf32>
    %75 = vector.broadcast %74 : vector<1x32xf32> to vector<8x32xf32>
    %76 = arith.addf %73, %75 : vector<8x32xf32>
    %c3 = arith.constant 3 : index
    %c0_40 = arith.constant 0 : index
    %77 = vector.load %arg2[%c3, %c0_40] : memref<13x32xf32, #tpu.memory_space<vmem>>, vector<1x32xf32>
    %c4 = arith.constant 4 : index
    %c0_41 = arith.constant 0 : index
    %78 = vector.load %arg2[%c4, %c0_41] : memref<13x32xf32, #tpu.memory_space<vmem>>, vector<1x32xf32>
    %cst_42 = arith.constant dense<0.000000e+00> : vector<32xf32>
    %79 = vector.multi_reduction <add>, %76, %cst_42 [0] : vector<8x32xf32> to vector<32xf32>
    %80 = vector.shape_cast %79 : vector<32xf32> to vector<1x32xf32>
    %81 = arith.mulf %76, %76 : vector<8x32xf32>
    %cst_43 = arith.constant dense<0.000000e+00> : vector<32xf32>
    %82 = vector.multi_reduction <add>, %81, %cst_43 [0] : vector<8x32xf32> to vector<32xf32>
    %83 = vector.shape_cast %82 : vector<32xf32> to vector<1x32xf32>
    %cst_44 = arith.constant 1.250000e-01 : f32
    %84 = vector.broadcast %cst_44 : f32 to vector<1x32xf32>
    %85 = arith.mulf %80, %84 : vector<1x32xf32>
    %cst_45 = arith.constant 1.250000e-01 : f32
    %86 = vector.broadcast %cst_45 : f32 to vector<1x32xf32>
    %87 = arith.mulf %83, %86 : vector<1x32xf32>
    %88 = arith.mulf %85, %85 : vector<1x32xf32>
    %89 = arith.subf %87, %88 : vector<1x32xf32>
    %cst_46 = arith.constant 0.000000e+00 : f32
    %90 = vector.broadcast %cst_46 : f32 to vector<1x32xf32>
    %91 = arith.maximumf %89, %90 : vector<1x32xf32>
    %92 = vector.broadcast %85 : vector<1x32xf32> to vector<8x32xf32>
    %93 = arith.subf %76, %92 : vector<8x32xf32>
    %cst_47 = arith.constant 9.99999974E-6 : f32
    %94 = vector.broadcast %cst_47 : f32 to vector<1x32xf32>
    %95 = arith.addf %91, %94 : vector<1x32xf32>
    %96 = math.rsqrt %95 : vector<1x32xf32>
    %97 = vector.broadcast %96 : vector<1x32xf32> to vector<8x32xf32>
    %98 = arith.mulf %93, %97 : vector<8x32xf32>
    %99 = vector.broadcast %77 : vector<1x32xf32> to vector<8x32xf32>
    %100 = arith.mulf %98, %99 : vector<8x32xf32>
    %101 = vector.broadcast %78 : vector<1x32xf32> to vector<8x32xf32>
    %102 = arith.addf %100, %101 : vector<8x32xf32>
    %cst_48 = arith.constant 0.000000e+00 : f32
    %103 = vector.broadcast %cst_48 : f32 to vector<8x32xf32>
    %104 = arith.maximumf %102, %103 : vector<8x32xf32>
    %c336 = arith.constant 336 : index
    %c0_49 = arith.constant 0 : index
    %105 = vector.load %arg1[%c336, %c0_49] : memref<432x176xbf16, #tpu.memory_space<vmem>>, vector<32x16xbf16>
    %106 = arith.truncf %104 : vector<8x32xf32> to vector<8x32xbf16>
    %cst_50 = arith.constant dense<0.000000e+00> : vector<8x16xf32>
    %107 = tpu.matmul %106, %105, %cst_50 {dimension_numbers = #tpu.dot_dimension_numbers<[1], [0], [0], [1], [0, 0, 1, 1], [], []>} : vector<8x32xbf16>, vector<32x16xbf16>, vector<8x16xf32> -> vector<8x16xf32>
    %c5 = arith.constant 5 : index
    %c0_51 = arith.constant 0 : index
    %108 = vector.load %arg2[%c5, %c0_51] : memref<13x32xf32, #tpu.memory_space<vmem>>, vector<1x16xf32>
    %109 = vector.broadcast %108 : vector<1x16xf32> to vector<8x16xf32>
    %110 = arith.addf %107, %109 : vector<8x16xf32>
    %c6 = arith.constant 6 : index
    %c0_52 = arith.constant 0 : index
    %111 = vector.load %arg2[%c6, %c0_52] : memref<13x32xf32, #tpu.memory_space<vmem>>, vector<1x16xf32>
    %c7 = arith.constant 7 : index
    %c0_53 = arith.constant 0 : index
    %112 = vector.load %arg2[%c7, %c0_53] : memref<13x32xf32, #tpu.memory_space<vmem>>, vector<1x16xf32>
    %cst_54 = arith.constant dense<0.000000e+00> : vector<16xf32>
    %113 = vector.multi_reduction <add>, %110, %cst_54 [0] : vector<8x16xf32> to vector<16xf32>
    %114 = vector.shape_cast %113 : vector<16xf32> to vector<1x16xf32>
    %115 = arith.mulf %110, %110 : vector<8x16xf32>
    %cst_55 = arith.constant dense<0.000000e+00> : vector<16xf32>
    %116 = vector.multi_reduction <add>, %115, %cst_55 [0] : vector<8x16xf32> to vector<16xf32>
    %117 = vector.shape_cast %116 : vector<16xf32> to vector<1x16xf32>
    %cst_56 = arith.constant 1.250000e-01 : f32
    %118 = vector.broadcast %cst_56 : f32 to vector<1x16xf32>
    %119 = arith.mulf %114, %118 : vector<1x16xf32>
    %cst_57 = arith.constant 1.250000e-01 : f32
    %120 = vector.broadcast %cst_57 : f32 to vector<1x16xf32>
    %121 = arith.mulf %117, %120 : vector<1x16xf32>
    %122 = arith.mulf %119, %119 : vector<1x16xf32>
    %123 = arith.subf %121, %122 : vector<1x16xf32>
    %cst_58 = arith.constant 0.000000e+00 : f32
    %124 = vector.broadcast %cst_58 : f32 to vector<1x16xf32>
    %125 = arith.maximumf %123, %124 : vector<1x16xf32>
    %126 = vector.broadcast %119 : vector<1x16xf32> to vector<8x16xf32>
    %127 = arith.subf %110, %126 : vector<8x16xf32>
    %cst_59 = arith.constant 9.99999974E-6 : f32
    %128 = vector.broadcast %cst_59 : f32 to vector<1x16xf32>
    %129 = arith.addf %125, %128 : vector<1x16xf32>
    %130 = math.rsqrt %129 : vector<1x16xf32>
    %131 = vector.broadcast %130 : vector<1x16xf32> to vector<8x16xf32>
    %132 = arith.mulf %127, %131 : vector<8x16xf32>
    %133 = vector.broadcast %111 : vector<1x16xf32> to vector<8x16xf32>
    %134 = arith.mulf %132, %133 : vector<8x16xf32>
    %135 = vector.broadcast %112 : vector<1x16xf32> to vector<8x16xf32>
    %136 = arith.addf %134, %135 : vector<8x16xf32>
    %cst_60 = arith.constant 0.000000e+00 : f32
    %137 = vector.broadcast %cst_60 : f32 to vector<8x16xf32>
    %138 = arith.maximumf %136, %137 : vector<8x16xf32>
    %c11 = arith.constant 11 : index
    %c0_61 = arith.constant 0 : index
    %139 = vector.load %arg2[%c11, %c0_61] : memref<13x32xf32, #tpu.memory_space<vmem>>, vector<1x16xf32>
    %140 = vector.broadcast %139 : vector<1x16xf32> to vector<8x16xf32>
    %141 = arith.mulf %138, %140 : vector<8x16xf32>
    %cst_62 = arith.constant dense<0.000000e+00> : vector<8xf32>
    %142 = vector.multi_reduction <add>, %141, %cst_62 [1] : vector<8x16xf32> to vector<8xf32>
    %143 = vector.shape_cast %142 : vector<8xf32> to vector<8x1xf32>
    %144 = arith.addf %45, %143 : vector<8x1xf32>
    %c12 = arith.constant 12 : index
    %c0_63 = arith.constant 0 : index
    %145 = vector.load %arg2[%c12, %c0_63] : memref<13x32xf32, #tpu.memory_space<vmem>>, vector<1x1xf32>
    %146 = vector.broadcast %145 : vector<1x1xf32> to vector<8x1xf32>
    %147 = arith.addf %144, %146 : vector<8x1xf32>
    %148 = arith.negf %147 : vector<8x1xf32>
    %149 = math.exp %148 : vector<8x1xf32>
    %cst_64 = arith.constant 1.000000e+00 : f32
    %150 = vector.broadcast %cst_64 : f32 to vector<8x1xf32>
    %151 = arith.addf %150, %149 : vector<8x1xf32>
    %152 = arith.divf %150, %151 : vector<8x1xf32>
    %c0_65 = arith.constant 0 : index
    %c0_66 = arith.constant 0 : index
    %153 = vector.load %arg3[%c0_65, %c0_66] : memref<8x1xf32, #tpu.memory_space<vmem>>, vector<8x1xf32>
    tpu.vector_store %arg3[%c0_65, %c0_66], %152 {strides = array<i32>} : memref<8x1xf32, #tpu.memory_space<vmem>>, vector<8x1xf32>,
    return
  }
}

</mosaic_0001>

<llo_original>
// kernel: assembly1_forward.1
$region0: #{assembly1_forward.1}
  #allocation0 [shape = 'u32[]', space=smem, size = 0x4, offset = 0x4, fixed_abs, tag = 'smem constant byte address 0x4 - core index']
  #allocation1 [shape = 'u32[72,128]{1,0:T(1,128)}', space=vmem, size = 0x9000, scoped, tag = 'internal scratch']
  %s0 = inlined_call_operand.vmem [shape: f32[8,560], index: 0, kind: input, shape index: {}]
  %s1 = inlined_call_operand.vmem [shape: bf16[432,176], index: 1, kind: input, shape index: {}]
  %s2 = inlined_call_operand.vmem [shape: f32[13,32], index: 2, kind: input, shape index: {}]
  %s3 = inlined_call_operand.vmem [shape: f32[8,1], index: 3, kind: output, shape index: {}]
  %s4 = sld [smem:[#allocation0]]
  $region22: #{assembly1_forward.1} parent=0
    _
  %s6 = ssub.s32 1, %s4
  %s7 = scalar_select 0, %s6, %s4
  // Predicated region
  $region2: #{assembly1_forward.1} parent=0 // pred_check
    _
  $region3: #{assembly1_forward.1} parent=0 // pred_check_branch
    %9 = sbr.rel (0) target = $region5
  $region4: #{assembly1_forward.1} parent=0 // pred_region
    _
  $region5: #{assembly1_forward.1} parent=0 // pred_fallthru
    _
  // Predicated region
  $region6: #{assembly1_forward.1} parent=0 // pred_check
    _
  $region7: #{assembly1_forward.1} parent=0 // pred_check_branch
    %11 = sbr.rel (0) target = $region9
  $region8: #{assembly1_forward.1} parent=0 // pred_region
    _
  $region9: #{assembly1_forward.1} parent=0 // pred_fallthru
    _
  // Predicated region
  $region10: #{assembly1_forward.1} parent=0 // pred_check
    _
  $region11: #{assembly1_forward.1} parent=0 // pred_check_branch
    %13 = sbr.rel (0) target = $region13
  $region12: #{assembly1_forward.1} parent=0 // pred_region
    _
  $region13: #{assembly1_forward.1} parent=0 // pred_fallthru
    _
  %v15 = vld [vmem:[%s0] sm:$0xff]
  %v16 = vld [vmem:[%s0 + $0x8] sm:$0xff]
  %v17 = vld [vmem:[%s0 + $0x10] sm:$0xff]
  %v18 = vld [vmem:[%s0 + $0x18] sm:$0xff]
  %v19 = vld [vmem:[%s0 + $0x20] sm:$0xff]
  %v20 = vld [vmem:[%s2 + $0x8] sm:$0x1]
  %v21 = vperm.slane %v20, 0
  %v22 = vmul.f32 %v15, %v21
  %vm23 = vcmask 23552
  %v24 = vsel %vm23, %v22, 0.0
  %25 = vadd.xlane.f32.xlu0 %v24
  %v26 = vpop.xlane.xlu0 %25
  %v27 = vld [vmem:[%s1] sm:$0xf]
  %v28 = vld [vmem:[%s1 + $0x8] sm:$0xf]
  %v29 = vld [vmem:[%s1 + $0x10] sm:$0xf]
  %v30 = vld [vmem:[%s1 + $0x18] sm:$0xf]
  %v31 = vpack.c.bf16 %v16, %v16
  %v36 = vunpack.c.l.b16 %v27
  %v37 = vunpack.c.l.b16 %v28
  %v38 = vunpack.c.l.b16 %v29
  %v39 = vunpack.c.l.b16 %v30
  %v40 = vpack.c.b16 %v37, %v36
  %v41 = vpack.c.b16 %v39, %v38
  %vm44 = vcmask 261120
  %v46 = vsel %vm44, %v31, 0
  %48 = vmatpush.bf16.msra.mxu0 0
  %49 = vmatpush.bf16.msra.mxu0 0
  %50 = vmatpush.bf16.msra.mxu0 0
  %51 = vmatpush.bf16.msra.mxu0 0
  %52 = vmatpush.bf16.msra.mxu0 0
  %53 = vmatpush.bf16.msra.mxu0 0
  %54 = vmatpush.bf16.msra.mxu0 %v41
  %55 = vmatpush.bf16.msra.mxu0 %v40
  %56 = vmatmul.bf16.gmra.mxu0 %v46
  %v57 = vpop.f32.mrf.mxu0
  %v58 = vadd.f32 0.0, %v57
  %v59 = vpop.f32.mrf.mxu0
  %60 = vdwg.mxu0
  %v61 = vmul.f32 %v17, %v58
  %v62 = vld [vmem:[%s1 + $0x40] sm:$0xf]
  %v63 = vld [vmem:[%s1 + $0x48] sm:$0xf]
  %v64 = vld [vmem:[%s1 + $0x50] sm:$0xf]
  %v65 = vld [vmem:[%s1 + $0x58] sm:$0xf]
  %v66 = vld [vmem:[%s1 + $0x60] sm:$0xf]
  %v67 = vld [vmem:[%s1 + $0x68] sm:$0xf]
  %v68 = vld [vmem:[%s1 + $0x70] sm:$0xf]
  %v69 = vld [vmem:[%s1 + $0x78] sm:$0xf]
  %v70 = vld [vmem:[%s1 + $0x80] sm:$0xf]
  %v71 = vld [vmem:[%s1 + $0x88] sm:$0xf]
  %v72 = vld [vmem:[%s1 + $0x90] sm:$0xf]
  %v73 = vld [vmem:[%s1 + $0x98] sm:$0xf]
  %v74 = vld [vmem:[%s1 + $0xa0] sm:$0xf]
  %v75 = vld [vmem:[%s1 + $0xa8] sm:$0xf]
  %v76 = vld [vmem:[%s1 + $0xb0] sm:$0xf]
  %v77 = vld [vmem:[%s1 + $0xb8] sm:$0xf]
  %v78 = vpack.c.bf16 %v61, %v61
  %v79 = vld [vmem:[%s2] sm:$0x1]
  %v80 = vperm.slane %v79, 0
  %v97 = vunpack.c.l.b16 %v62
  %v98 = vunpack.c.l.b16 %v63
  %v99 = vunpack.c.l.b16 %v64
  %v100 = vunpack.c.l.b16 %v65
  %v101 = vunpack.c.l.b16 %v66
  %v102 = vunpack.c.l.b16 %v67
  %v103 = vunpack.c.l.b16 %v68
  %v104 = vunpack.c.l.b16 %v69
  %v105 = vunpack.c.l.b16 %v70
  %v106 = vunpack.c.l.b16 %v71
  %v107 = vunpack.c.l.b16 %v72
  %v108 = vunpack.c.l.b16 %v73
  %v109 = vunpack.c.l.b16 %v74
  %v110 = vunpack.c.l.b16 %v75
  %v111 = vunpack.c.l.b16 %v76
  %v112 = vunpack.c.l.b16 %v77
  %v113 = vpack.c.b16 %v98, %v97
  %v114 = vpack.c.b16 %v100, %v99
  %v115 = vpack.c.b16 %v102, %v101
  %v116 = vpack.c.b16 %v104, %v103
  %v117 = vpack.c.b16 %v106, %v105
  %v118 = vpack.c.b16 %v108, %v107
  %v119 = vpack.c.b16 %v110, %v109
  %v120 = vpack.c.b16 %v112, %v111
  %129 = vmatpush.bf16.msra.mxu0 %v120
  %130 = vmatpush.bf16.msra.mxu0 %v119
  %131 = vmatpush.bf16.msra.mxu0 %v118
  %132 = vmatpush.bf16.msra.mxu0 %v117
  %133 = vmatpush.bf16.msra.mxu0 %v116
  %134 = vmatpush.bf16.msra.mxu0 %v115
  %135 = vmatpush.bf16.msra.mxu0 %v114
  %136 = vmatpush.bf16.msra.mxu0 %v113
  %137 = vmatmul.bf16.gmra.mxu0 %v78
  %v138 = vpop.f32.mrf.mxu0
  %v139 = vadd.f32 %v80, %v138
  %v140 = vpop.f32.mrf.mxu0
  %141 = vdwg.mxu0
  %v142 = vmax.f32 %v139, 0.0
  %v143 = vld [vmem:[%s2 + $0x9] sm:$0x1]
  %v144 = vperm.slane %v143, 0
  %v145 = vmul.f32 %v142, %v144
  %v146 = vsel %vm44, %v145, 0.0
  %147 = vadd.xlane.f32.xlu0 %v146
  %v148 = vpop.xlane.xlu0 %147
  %v149 = vadd.f32 %v26, %v148
  %v150 = vld [vmem:[%s1 + $0x20] sm:$0xf]
  %v151 = vld [vmem:[%s1 + $0x28] sm:$0xf]
  %v152 = vld [vmem:[%s1 + $0x30] sm:$0xf]
  %v153 = vld [vmem:[%s1 + $0x38] sm:$0xf]
  %v154 = vpack.c.bf16 %v142, %v142
  %v159 = vunpack.c.l.b16 %v150
  %v160 = vunpack.c.l.b16 %v151
  %v161 = vunpack.c.l.b16 %v152
  %v162 = vunpack.c.l.b16 %v153
  %v163 = vpack.c.b16 %v160, %v159
  %v164 = vpack.c.b16 %v162, %v161
  %v168 = vsel %vm44, %v154, 0
  %170 = vmatpush.bf16.msra.mxu0 0
  %171 = vmatpush.bf16.msra.mxu0 0
  %172 = vmatpush.bf16.msra.mxu0 0
  %173 = vmatpush.bf16.msra.mxu0 0
  %174 = vmatpush.bf16.msra.mxu0 0
  %175 = vmatpush.bf16.msra.mxu0 0
  %176 = vmatpush.bf16.msra.mxu0 %v164
  %177 = vmatpush.bf16.msra.mxu0 %v163
  %178 = vmatmul.bf16.gmra.mxu0 %v168
  %v179 = vpop.f32.mrf.mxu0
  %v180 = vadd.f32 0.0, %v179
  %v181 = vpop.f32.mrf.mxu0
  %182 = vdwg.mxu0
  %v183 = vmul.f32 %v17, %v180
  %v184 = vpack.c.bf16 %v183, %v183
  %v185 = vld [vmem:[%s2 + $0x1] sm:$0x1]
  %v186 = vperm.slane %v185, 0
  %187 = vmatpush.bf16.msra.mxu0 %v120
  %188 = vmatpush.bf16.msra.mxu0 %v119
  %189 = vmatpush.bf16.msra.mxu0 %v118
  %190 = vmatpush.bf16.msra.mxu0 %v117
  %191 = vmatpush.bf16.msra.mxu0 %v116
  %192 = vmatpush.bf16.msra.mxu0 %v115
  %193 = vmatpush.bf16.msra.mxu0 %v114
  %194 = vmatpush.bf16.msra.mxu0 %v113
  %195 = vmatmul.bf16.gmra.mxu0 %v184
  %v196 = vpop.f32.mrf.mxu0
  %v197 = vadd.f32 %v186, %v196
  %v198 = vpop.f32.mrf.mxu0
  %199 = vdwg.mxu0
  %v200 = vmax.f32 %v197, 0.0
  %v201 = vld [vmem:[%s2 + $0xa] sm:$0x1]
  %v202 = vperm.slane %v201, 0
  %v203 = vmul.f32 %v200, %v202
  %v204 = vsel %vm44, %v203, 0.0
  %205 = vadd.xlane.f32.xlu0 %v204
  %v206 = vpop.xlane.xlu0 %205
  %v207 = vadd.f32 %v149, %v206
  %v208 = vld [vmem:[%s1 + $0x170] sm:$0xf]
  %v209 = vld [vmem:[%s1 + $0x178] sm:$0xf]
  %v210 = vld [vmem:[%s1 + $0x180] sm:$0xf]
  %v211 = vld [vmem:[%s1 + $0x188] sm:$0xf]
  %v216 = vunpack.c.l.b16 %v208
  %v217 = vunpack.c.l.b16 %v209
  %v218 = vunpack.c.l.b16 %v210
  %v219 = vunpack.c.l.b16 %v211
  %v220 = vpack.c.b16 %v217, %v216
  %v221 = vpack.c.b16 %v219, %v218
  %224 = vmatpush.bf16.msra.mxu0 0
  %225 = vmatpush.bf16.msra.mxu0 0
  %226 = vmatpush.bf16.msra.mxu0 0
  %227 = vmatpush.bf16.msra.mxu0 0
  %228 = vmatpush.bf16.msra.mxu0 0
  %229 = vmatpush.bf16.msra.mxu0 0
  %230 = vmatpush.bf16.msra.mxu0 %v221
  %231 = vmatpush.bf16.msra.mxu0 %v220
  %232 = vmatmul.bf16.gmra.mxu0 %v46
  %v233 = vpop.f32.mrf.mxu0
  %v234 = vadd.f32 0.0, %v233
  %v235 = vpop.f32.mrf.mxu0
  %236 = vdwg.mxu0
  %v237 = vmax.f32 %v234, 0.0
  %v238 = vld [vmem:[%s1 + $0x190] sm:$0x1]
  %v239 = vpack.c.bf16 %v237, %v237
  %vm240 = vcmask 7168
  %v242 = vsel %vm240, %v239, 0
  %vm244 = vcmask 1040384
  %v245 = vsel 0, 4294967295, 65535
  %v246 = vsel %vm244, %v245, 0
  %v248 = vand.u32 %v238, %v246
  %250 = vmatpush.bf16.msra.mxu0 0
  %251 = vmatpush.bf16.msra.mxu0 0
  %252 = vmatpush.bf16.msra.mxu0 0
  %253 = vmatpush.bf16.msra.mxu0 0
  %254 = vmatpush.bf16.msra.mxu0 0
  %255 = vmatpush.bf16.msra.mxu0 0
  %256 = vmatpush.bf16.msra.mxu0 0
  %257 = vmatpush.bf16.msra.mxu0 %v248
  %258 = vmatmul.bf16.gmra.mxu0 %v242
  %v259 = vpop.f32.mrf.mxu0
  %v260 = vadd.f32 0.0, %v259
  %v261 = vpop.f32.mrf.mxu0
  %262 = vdwg.mxu0
  %v263 = vmax.f32 %v260, 0.0
  %v264 = vld [vmem:[%s1 + $0x1a0] sm:$0x33]
  %v265 = vpack.c.bf16 %v263, %v263
  %v267 = vunpack.c.l.b16 %v264
  %v268 = vunpack.c.h.b16 %v264
  %v269 = vpack.c.b16 %v267, %v267
  %v270 = vpack.c.b16 %v268, %v268
  %vm271 = vcmask 31744
  %v273 = vsel %vm271, %v265, 0
  %vm275 = vcmask 1041408
  %v277 = vsel %vm275, %v269, 0
  %v280 = vsel %vm275, %v270, 0
  %282 = vmatpush.bf16.msra.mxu0 0
  %283 = vmatpush.bf16.msra.mxu0 0
  %284 = vmatpush.bf16.msra.mxu0 0
  %285 = vmatpush.bf16.msra.mxu0 0
  %286 = vmatpush.bf16.msra.mxu0 0
  %287 = vmatpush.bf16.msra.mxu0 0
  %288 = vmatpush.bf16.msra.mxu0 0
  %289 = vmatpush.bf16.msra.mxu0 %v277
  %290 = vmatmul.bf16.gmra.mxu0 %v273
  %v291 = vpop.f32.mrf.mxu0
  %v292 = vadd.f32 0.0, %v291
  %v293 = vpop.f32.mrf.mxu0
  %294 = vdwg.mxu0
  %295 = vmatpush.bf16.msra.mxu0 0
  %296 = vmatpush.bf16.msra.mxu0 0
  %297 = vmatpush.bf16.msra.mxu0 0
  %298 = vmatpush.bf16.msra.mxu0 0
  %299 = vmatpush.bf16.msra.mxu0 0
  %300 = vmatpush.bf16.msra.mxu0 0
  %301 = vmatpush.bf16.msra.mxu0 0
  %302 = vmatpush.bf16.msra.mxu0 %v280
  %303 = vmatmul.bf16.gmra.mxu0 %v273
  %v304 = vpop.f32.mrf.mxu0
  %v305 = vadd.f32 0.0, %v304
  %v306 = vpop.f32.mrf.mxu0
  %307 = vdwg.mxu0
  %v308 = vld [vmem:[%s1 + $0xc0] sm:$0xf]
  %v309 = vld [vmem:[%s1 + $0xc8] sm:$0xf]
  %v310 = vld [vmem:[%s1 + $0xd0] sm:$0xf]
  %v311 = vld [vmem:[%s1 + $0xd8] sm:$0xf]
  %v312 = vld [vmem:[%s1 + $0xe0] sm:$0xf]
  %v313 = vld [vmem:[%s1 + $0xe8] sm:$0xf]
  %v314 = vpack.c.bf16 %v18, %v18
  %v321 = vunpack.c.l.b16 %v308
  %v322 = vunpack.c.l.b16 %v309
  %v323 = vunpack.c.l.b16 %v310
  %v324 = vunpack.c.l.b16 %v311
  %v325 = vunpack.c.l.b16 %v312
  %v326 = vunpack.c.l.b16 %v313
  %v327 = vpack.c.b16 %v322, %v321
  %v328 = vpack.c.b16 %v324, %v323
  %v329 = vpack.c.b16 %v326, %v325
  %vm333 = vcmask 392192
  %v335 = vsel %vm333, %v314, 0
  %337 = vmatpush.bf16.msra.mxu0 0
  %338 = vmatpush.bf16.msra.mxu0 0
  %339 = vmatpush.bf16.msra.mxu0 0
  %340 = vmatpush.bf16.msra.mxu0 0
  %341 = vmatpush.bf16.msra.mxu0 0
  %342 = vmatpush.bf16.msra.mxu0 %v329
  %343 = vmatpush.bf16.msra.mxu0 %v328
  %344 = vmatpush.bf16.msra.mxu0 %v327
  %345 = vmatmul.bf16.gmra.mxu0 %v335
  %v346 = vpop.f32.mrf.mxu0
  %v347 = vadd.f32 0.0, %v346
  %v348 = vpop.f32.mrf.mxu0
  %349 = vdwg.mxu0
  %v350 = vmul.f32 %v347, %v19
  %v351 = vmul.f32 %v350, %v292
  %v352 = vmul.f32 %v351, %v305
  %v353 = vld [vmem:[%s1 + $0xf0] sm:$0xf]
  %v354 = vld [vmem:[%s1 + $0xf8] sm:$0xf]
  %v355 = vld [vmem:[%s1 + $0x100] sm:$0xf]
  %v356 = vld [vmem:[%s1 + $0x108] sm:$0xf]
  %v357 = vld [vmem:[%s1 + $0x110] sm:$0xf]
  %v358 = vld [vmem:[%s1 + $0x118] sm:$0xf]
  %v359 = vpack.c.bf16 %v350, %v350
  %v360 = vld [vmem:[%s1 + $0x120] sm:$0xf]
  %v361 = vld [vmem:[%s1 + $0x128] sm:$0xf]
  %v362 = vld [vmem:[%s1 + $0x130] sm:$0xf]
  %v363 = vld [vmem:[%s1 + $0x138] sm:$0xf]
  %v364 = vld [vmem:[%s1 + $0x140] sm:$0xf]
  %v365 = vld [vmem:[%s1 + $0x148] sm:$0xf]
  %v366 = vpack.c.bf16 %v352, %v352
  %v373 = vunpack.c.l.b16 %v360
  %v374 = vunpack.c.l.b16 %v361
  %v375 = vunpack.c.l.b16 %v362
  %v376 = vunpack.c.l.b16 %v363
  %v377 = vunpack.c.l.b16 %v364
  %v378 = vunpack.c.l.b16 %v365
  %v379 = vpack.c.b16 %v374, %v373
  %v380 = vpack.c.b16 %v376, %v375
  %v381 = vpack.c.b16 %v378, %v377
  %v386 = vsel %vm333, %v366, 0
  %388 = vmatpush.bf16.msra.mxu0 0
  %389 = vmatpush.bf16.msra.mxu0 0
  %390 = vmatpush.bf16.msra.mxu0 0
  %391 = vmatpush.bf16.msra.mxu0 0
  %392 = vmatpush.bf16.msra.mxu0 0
  %393 = vmatpush.bf16.msra.mxu0 %v381
  %394 = vmatpush.bf16.msra.mxu0 %v380
  %395 = vmatpush.bf16.msra.mxu0 %v379
  %396 = vmatmul.bf16.gmra.mxu0 %v386
  %v397 = vpop.f32.mrf.mxu0
  %v398 = vadd.f32 0.0, %v397
  %v399 = vpop.f32.mrf.mxu0
  %400 = vdwg.mxu0
  %v407 = vunpack.c.l.b16 %v353
  %v408 = vunpack.c.l.b16 %v354
  %v409 = vunpack.c.l.b16 %v355
  %v410 = vunpack.c.l.b16 %v356
  %v411 = vunpack.c.l.b16 %v357
  %v412 = vunpack.c.l.b16 %v358
  %v413 = vpack.c.b16 %v408, %v407
  %v414 = vpack.c.b16 %v410, %v409
  %v415 = vpack.c.b16 %v412, %v411
  %v420 = vsel %vm333, %v359, 0
  %422 = vmatpush.bf16.msra.mxu0 0
  %423 = vmatpush.bf16.msra.mxu0 0
  %424 = vmatpush.bf16.msra.mxu0 0
  %425 = vmatpush.bf16.msra.mxu0 0
  %426 = vmatpush.bf16.msra.mxu0 0
  %427 = vmatpush.bf16.msra.mxu0 %v415
  %428 = vmatpush.bf16.msra.mxu0 %v414
  %429 = vmatpush.bf16.msra.mxu0 %v413
  %430 = vmatmul.bf16.gmra.mxu0 %v420
  %v431 = vpop.f32.mrf.mxu0
  %v432 = vadd.f32 %v398, %v431
  %v433 = vpop.f32.mrf.mxu0
  %434 = vdwg.mxu0
  %v435 = vld [vmem:[%s2 + $0x2] sm:$0x1]
  %v436 = vperm.slane %v435, 0
  %v437 = vadd.f32 %v432, %v436
  %v438 = vld [vmem:[%s2 + $0x3] sm:$0x1]
  %v439 = vld [vmem:[%s2 + $0x4] sm:$0x1]
  %v440 = vsel %vm44, %v437, 0.0
  %v441 = vrot.slane %v440, 4
  %v442 = vadd.f32 %v440, %v441
  %v443 = vrot.slane %v442, 2
  %v444 = vadd.f32 %v442, %v443
  %v445 = vrot.slane %v444, 1
  %v446 = vadd.f32 %v444, %v445
  %v447 = vmul.f32 %v437, %v437
  %v448 = vsel %vm44, %v447, 0.0
  %v449 = vrot.slane %v448, 4
  %v450 = vadd.f32 %v448, %v449
  %v451 = vrot.slane %v450, 2
  %v452 = vadd.f32 %v450, %v451
  %v453 = vrot.slane %v452, 1
  %v454 = vadd.f32 %v452, %v453
  %v455 = vmul.f32 %v446, 0.125
  %v456 = vmul.f32 %v454, 0.125
  %v457 = vmul.f32 %v455, %v455
  %v458 = vsub.f32 %v456, %v457
  %v459 = vmax.f32 %v458, 0.0
  %v460 = vsub.f32 %v437, %v455
  %v461 = vadd.f32 %v459, 1e-05
  %v462 = vrsqrt.pop %v461
  %v463 = vmul.f32 %v462, %v461
  %v464 = vmul.f32 %v463, %v462
  %v465 = vmul.f32 0.5, %v464
  %v466 = vsub.f32 1.5, %v465
  %v467 = vmul.f32 %v462, %v466
  %vm468 = vweird.f32 %v461
  %vm469 = vweird.f32 %v462
  %vm470 = vmor %vm468, %vm469
  %v471 = vsel %vm470, %v462, %v467
  %v472 = vmul.f32 %v460, %v471
  %v473 = vperm.slane %v438, 0
  %v474 = vmul.f32 %v472, %v473
  %v475 = vperm.slane %v439, 0
  %v476 = vadd.f32 %v474, %v475
  %v477 = vmax.f32 %v476, 0.0
  %v478 = vld [vmem:[%s1 + $0x150] sm:$0xf]
  %v479 = vld [vmem:[%s1 + $0x158] sm:$0xf]
  %v480 = vld [vmem:[%s1 + $0x160] sm:$0xf]
  %v481 = vld [vmem:[%s1 + $0x168] sm:$0xf]
  %v482 = vpack.c.bf16 %v477, %v477
  %v483 = vld [vmem:[%s2 + $0x5] sm:$0x1]
  %v484 = vperm.slane %v483, 0
  %v489 = vunpack.c.l.b16 %v478
  %v490 = vunpack.c.l.b16 %v479
  %v491 = vunpack.c.l.b16 %v480
  %v492 = vunpack.c.l.b16 %v481
  %v493 = vpack.c.b16 %v490, %v489
  %v494 = vpack.c.b16 %v492, %v491
  %v498 = vsel %vm44, %v482, 0
  %500 = vmatpush.bf16.msra.mxu0 0
  %501 = vmatpush.bf16.msra.mxu0 0
  %502 = vmatpush.bf16.msra.mxu0 0
  %503 = vmatpush.bf16.msra.mxu0 0
  %504 = vmatpush.bf16.msra.mxu0 0
  %505 = vmatpush.bf16.msra.mxu0 0
  %506 = vmatpush.bf16.msra.mxu0 %v494
  %507 = vmatpush.bf16.msra.mxu0 %v493
  %508 = vmatmul.bf16.gmra.mxu0 %v498
  %v509 = vpop.f32.mrf.mxu0
  %v510 = vadd.f32 %v484, %v509
  %v511 = vpop.f32.mrf.mxu0
  %512 = vdwg.mxu0
  %v513 = vld [vmem:[%s2 + $0x6] sm:$0x1]
  %v514 = vld [vmem:[%s2 + $0x7] sm:$0x1]
  %vm515 = vcmask 130048
  %v516 = vsel %vm515, %v510, 0.0
  %v517 = vrot.slane %v516, 4
  %v518 = vadd.f32 %v516, %v517
  %v519 = vrot.slane %v518, 2
  %v520 = vadd.f32 %v518, %v519
  %v521 = vrot.slane %v520, 1
  %v522 = vadd.f32 %v520, %v521
  %v523 = vmul.f32 %v510, %v510
  %v524 = vsel %vm515, %v523, 0.0
  %v525 = vrot.slane %v524, 4
  %v526 = vadd.f32 %v524, %v525
  %v527 = vrot.slane %v526, 2
  %v528 = vadd.f32 %v526, %v527
  %v529 = vrot.slane %v528, 1
  %v530 = vadd.f32 %v528, %v529
  %v531 = vmul.f32 %v522, 0.125
  %v532 = vmul.f32 %v530, 0.125
  %v533 = vmul.f32 %v531, %v531
  %v534 = vsub.f32 %v532, %v533
  %v535 = vmax.f32 %v534, 0.0
  %v536 = vsub.f32 %v510, %v531
  %v537 = vadd.f32 %v535, 1e-05
  %v538 = vrsqrt.pop %v537
  %v539 = vmul.f32 %v538, %v537
  %v540 = vmul.f32 %v539, %v538
  %v541 = vmul.f32 0.5, %v540
  %v542 = vsub.f32 1.5, %v541
  %v543 = vmul.f32 %v538, %v542
  %vm544 = vweird.f32 %v537
  %vm545 = vweird.f32 %v538
  %vm546 = vmor %vm544, %vm545
  %v547 = vsel %vm546, %v538, %v543
  %v548 = vmul.f32 %v536, %v547
  %v549 = vperm.slane %v513, 0
  %v550 = vmul.f32 %v548, %v549
  %v551 = vperm.slane %v514, 0
  %v552 = vadd.f32 %v550, %v551
  %v553 = vmax.f32 %v552, 0.0
  %v554 = vld [vmem:[%s2 + $0xb] sm:$0x1]
  %v555 = vperm.slane %v554, 0
  %v556 = vmul.f32 %v553, %v555
  %v557 = vsel %vm515, %v556, 0.0
  %558 = vadd.xlane.f32.xlu0 %v557
  %v559 = vpop.xlane.xlu0 %558
  %v560 = vadd.f32 %v207, %v559
  %v561 = vld [vmem:[%s2 + $0xc] sm:$0x1]
  %v562 = vperm.slane %v561, 0
  %v563 = vadd.f32 %v560, %v562
  %v564 = vxor.u32 %v563, 2147483648
  %v565 = vmul.f32 %v564, 1.442695
  %v566 = vpow.pop %v565
  %v567 = vadd.f32 %v566, 1.0
  %v568 = vrcp.pop %v567
  %v569 = vmul.f32 %v567, %v568
  %v570 = vsub.f32 1.0, %v569
  %v571 = vmul.f32 %v568, %v570
  %v572 = vadd.f32 %v568, %v571
  %vm573 = vweird.f32 %v567
  %vm574 = vweird.f32 %v568
  %vm575 = vmor %vm573, %vm574
  %v576 = vsel %vm575, %v568, %v572
  %v577 = vand.u32 2147483647, %v567
  %vm578 = vcmp.eq.f32.partialorder %v577, 8.507059e+37
  %v579 = vand.u32 %v567, 2147483648
  %v580 = vor.u32 1.1754944e-38, %v579
  %v581 = vsel %vm578, %v580, %v576
  %v582 = vmul.f32 1.0, %v581
  %583 = vst.msk [vmem:[%s3] sm:$0xff] %vm240, %v582
  // Predicated region
  $region14: #{assembly1_forward.1} parent=0 // pred_check
    _
  $region15: #{assembly1_forward.1} parent=0 // pred_check_branch
    %585 = sbr.rel (0) target = $region17
  $region16: #{assembly1_forward.1} parent=0 // pred_region
    _
  $region17: #{assembly1_forward.1} parent=0 // pred_fallthru
    _
  // Predicated region
  $region18: #{assembly1_forward.1} parent=0 // pred_check
    _
  $region19: #{assembly1_forward.1} parent=0 // pred_check_branch
    %587 = sbr.rel (0) target = $region21
  $region20: #{assembly1_forward.1} parent=0 // pred_region
    _
  $region21: #{assembly1_forward.1} parent=0 // pred_fallthru
    _

</llo_original>
